<compile_context>
chip_gen: v6e
topology: v6e:2x2x1
jax: 0.10.0
libtpu: 0.0.40
codegen_flags: <defaults>
</compile_context>

<pallas_src>
import functools

import jax
import jax.numpy as jnp
from jax.experimental import pallas as pl
from jax.experimental.pallas import tpu as pltpu


IN_F = 28 * 28   # 784
HID = 200        # logical hidden width
OUT = 10         # logical number of classes
HID_P = 256      # padded hidden width (full MXU tiles on v6e/v7x, 2x128 on v5e)
OUT_P = 128      # padded logit width (lane-dense output stores)


def _round_up(n, m):
    return ((n + m - 1) // m) * m


def _pad2d(a, rows, cols, dtype):
    a = jnp.asarray(a)
    return jnp.pad(a, ((0, rows - a.shape[0]), (0, cols - a.shape[1]))).astype(dtype)


def mlp_kernel(x_ref, w1_ref, b1_ref, w2_ref, b2_ref, w3_ref, b3_ref, o_ref):
    # x arrives as f32 straight from HBM; cast to bf16 in-kernel (VPU work that
    # hides under MXU/DMA slack) instead of a separate wrapper-side pad/cast op.
    x = x_ref[...].astype(jnp.bfloat16)

    # fc1 + ReLU   (bf16 operands, f32 accumulate; bias/ReLU in f32)
    h1 = jnp.dot(x, w1_ref[...], preferred_element_type=jnp.float32)
    h1 = jnp.maximum(h1 + b1_ref[...], 0.0)
    # dropout1: identity in eval mode
    # TODO(synk): training-mode stochastic dropout (pltpu.prng_*) not implemented.

    # fc2 + ReLU
    h2 = jnp.dot(h1.astype(jnp.bfloat16), w2_ref[...],
                 preferred_element_type=jnp.float32)
    h2 = jnp.maximum(h2 + b2_ref[...], 0.0)
    # dropout1: identity in eval mode

    # fc3 (logits, no activation) -- lane-dense (TM, 128) store
    h3 = jnp.dot(h2.astype(jnp.bfloat16), w3_ref[...],
                 preferred_element_type=jnp.float32)
    o_ref[...] = (h3 + b3_ref[...]).astype(o_ref.dtype)


def prepare_params(params):
    """One-time weight/bias padding + bf16 cast (hoisted off the per-call path).

    Padding is mathematically exact: padded activation columns are always 0
    (zero weight cols + zero bias + ReLU), and padded logit columns are sliced
    off by the wrapper. Accepts biases shaped (F,) or (1, F).
    """
    w1, b1, w2, b2, w3, b3 = params
    as_row = lambda b: jnp.asarray(b).reshape(1, -1)
    return (
        _pad2d(w1, IN_F, HID_P, jnp.bfloat16),
        _pad2d(as_row(b1), 1, HID_P, jnp.float32),
        _pad2d(w2, HID_P, HID_P, jnp.bfloat16),
        _pad2d(as_row(b2), 1, HID_P, jnp.float32),
        _pad2d(w3, HID_P, OUT_P, jnp.bfloat16),
        _pad2d(as_row(b3), 1, OUT_P, jnp.float32),
    )


@functools.partial(jax.jit, static_argnames=("tile_m",))
def classifier_d_forward(x_nchw, prepared, *, tile_m=1024):
    """Forward pass of classifier_d. x_nchw: (B, C, 28, 28) float32."""
    w1p, b1p, w2p, b2p, w3p, b3p = prepared

    # x.view(-1, 28*28)  (row-major flatten, same as PyTorch .view). Kept f32.
    x2d = x_nchw.reshape(-1, IN_F).astype(jnp.float32)
    M = x2d.shape[0]

    # Batch tile: large enough to amortize ~0.35us/step grid overhead, but at
    # most ceil(M/2) rounded to the 8-row sublane granule so any batch worth
    # splitting yields >=2 grid steps (both v7x TensorCores busy under
    # dimension_semantics=("parallel",)). No batch padding: the last block may
    # be ragged and Pallas masks its partial output write.
    half = -(-M // 2)
    TM = min(tile_m, max(8, _round_up(half, 8)))
    grid = (pl.cdiv(M, TM),)

    # Weights/biases use a grid-invariant index map -> VMEM-resident across
    # batch-tile steps (no re-DMA per step).
    const = lambda shape: pl.BlockSpec(shape, lambda i: (0, 0))

    out = pl.pallas_call(
        mlp_kernel,
        out_shape=jax.ShapeDtypeStruct((M, OUT_P), jnp.float32),
        grid=grid,
        in_specs=[
            pl.BlockSpec((TM, IN_F), lambda i: (i, 0)),   # x (batch-tiled, f32)
            const((IN_F, HID_P)),                         # w1
            const((1, HID_P)),                            # b1
            const((HID_P, HID_P)),                        # w2
            const((1, HID_P)),                            # b2
            const((HID_P, OUT_P)),                        # w3
            const((1, OUT_P)),                            # b3
        ],
        out_specs=pl.BlockSpec((TM, OUT_P), lambda i: (i, 0)),
        compiler_params=pltpu.CompilerParams(
            dimension_semantics=("parallel",)),
    )(x2d, w1p, b1p, w2p, b2p, w3p, b3p)

    # Only the 10 -> 128 logit-lane padding remains to slice (rows are exact).
    return out[:, :OUT]


def init_params(key):
    """Deterministic init mimicking nn.Linear default: U(-1/sqrt(fan_in), +1/sqrt(fan_in))."""
    ks = jax.random.split(key, 6)

    def linear(kw, kb, fan_in, fan_out):
        bound = 1.0 / jnp.sqrt(jnp.float32(fan_in))
        w = jax.random.uniform(kw, (fan_in, fan_out), jnp.float32, -bound, bound)
        b = jax.random.uniform(kb, (fan_out,), jnp.float32, -bound, bound)
        return w, b

    w1, b1 = linear(ks[0], ks[1], IN_F, HID)
    w2, b2 = linear(ks[2], ks[3], HID, HID)
    w3, b3 = linear(ks[4], ks[5], HID, OUT)
    return (w1, b1, w2, b2, w3, b3)


if __name__ == "__main__":
    key = jax.random.PRNGKey(0)
    k_x, k_p = jax.random.split(key)

    # Small deterministic input consistent with the module: batch=2, NCHW (2,1,28,28)
    x = jax.random.normal(k_x, (2, 1, 28, 28), jnp.float32)
    params = init_params(k_p)
    prepared = prepare_params(params)          # one-time weight prep

    out = classifier_d_forward(x, prepared)
    out = jax.block_until_ready(out)
    assert out.shape == (2, 10)

    # Reference computed in the same mixed precision (bf16 operands, f32 accumulate).
    w1, b1, w2, b2, w3, b3 = params
    x2d = x.reshape(-1, IN_F)
    bf = jnp.bfloat16
    h = jnp.maximum(jnp.dot(x2d.astype(bf), w1.astype(bf),
                            preferred_element_type=jnp.float32) + b1, 0.0)
    h = jnp.maximum(jnp.dot(h.astype(bf), w2.astype(bf),
                            preferred_element_type=jnp.float32) + b2, 0.0)
    ref = jnp.dot(h.astype(bf), w3.astype(bf),
                  preferred_element_type=jnp.float32) + b3
    assert jnp.allclose(out, ref, atol=1e-2, rtol=1e-2), float(jnp.max(jnp.abs(out - ref)))

    print("KERNEL_OK")
</pallas_src>

<mosaic_0001>
module attributes {stable_mosaic.version = 11 : i64} {
  func.func @mlp_kernel(%arg0: i32, %arg1: memref<8x784xf32, #tpu.memory_space<vmem>>, %arg2: memref<784x256xbf16, #tpu.memory_space<vmem>>, %arg3: memref<1x256xf32, #tpu.memory_space<vmem>>, %arg4: memref<256x256xbf16, #tpu.memory_space<vmem>>, %arg5: memref<1x256xf32, #tpu.memory_space<vmem>>, %arg6: memref<256x128xbf16, #tpu.memory_space<vmem>>, %arg7: memref<1x128xf32, #tpu.memory_space<vmem>>, %arg8: memref<8x128xf32, #tpu.memory_space<vmem>>) attributes {dimension_semantics = [#tpu.dimension_semantics<parallel>], iteration_bounds = array<i64: 1>, scalar_prefetch = 0 : i64, scratch_operands = 0 : i64, tpu.core_type = #tpu.core_type<tc>, window_params = [{transform_indices = @transform_0, window_bounds = array<i64: 8, 784>}, {pipeline_mode = #tpu.pipeline_mode<synchronous>, transform_indices = @transform_1, window_bounds = array<i64: 784, 256>}, {pipeline_mode = #tpu.pipeline_mode<synchronous>, transform_indices = @transform_2, window_bounds = array<i64: 1, 256>}, {pipeline_mode = #tpu.pipeline_mode<synchronous>, transform_indices = @transform_3, window_bounds = array<i64: 256, 256>}, {pipeline_mode = #tpu.pipeline_mode<synchronous>, transform_indices = @transform_4, window_bounds = array<i64: 1, 256>}, {pipeline_mode = #tpu.pipeline_mode<synchronous>, transform_indices = @transform_5, window_bounds = array<i64: 256, 128>}, {pipeline_mode = #tpu.pipeline_mode<synchronous>, transform_indices = @transform_6, window_bounds = array<i64: 1, 128>}, {transform_indices = @transform_7, window_bounds = array<i64: 8, 128>}]} {
    %c0 = arith.constant 0 : index
    %c0_0 = arith.constant 0 : index
    %0 = vector.load %arg1[%c0, %c0_0] : memref<8x784xf32, #tpu.memory_space<vmem>>, vector<8x784xf32>
    %1 = arith.truncf %0 : vector<8x784xf32> to vector<8x784xbf16>
    %c0_1 = arith.constant 0 : index
    %c0_2 = arith.constant 0 : index
    %2 = vector.load %arg2[%c0_1, %c0_2] : memref<784x256xbf16, #tpu.memory_space<vmem>>, vector<784x256xbf16>
    %cst = arith.constant dense<0.000000e+00> : vector<8x256xf32>
    %3 = tpu.matmul %1, %2, %cst {dimension_numbers = #tpu.dot_dimension_numbers<[1], [0], [0], [1], [0, 0, 1, 1], [], []>} : vector<8x784xbf16>, vector<784x256xbf16>, vector<8x256xf32> -> vector<8x256xf32>
    %c0_3 = arith.constant 0 : index
    %c0_4 = arith.constant 0 : index
    %4 = vector.load %arg3[%c0_3, %c0_4] : memref<1x256xf32, #tpu.memory_space<vmem>>, vector<1x256xf32>
    %5 = vector.broadcast %4 : vector<1x256xf32> to vector<8x256xf32>
    %6 = arith.addf %3, %5 : vector<8x256xf32>
    %cst_5 = arith.constant 0.000000e+00 : f32
    %7 = vector.broadcast %cst_5 : f32 to vector<8x256xf32>
    %8 = arith.maximumf %6, %7 : vector<8x256xf32>
    %9 = arith.truncf %8 : vector<8x256xf32> to vector<8x256xbf16>
    %c0_6 = arith.constant 0 : index
    %c0_7 = arith.constant 0 : index
    %10 = vector.load %arg4[%c0_6, %c0_7] : memref<256x256xbf16, #tpu.memory_space<vmem>>, vector<256x256xbf16>
    %cst_8 = arith.constant dense<0.000000e+00> : vector<8x256xf32>
    %11 = tpu.matmul %9, %10, %cst_8 {dimension_numbers = #tpu.dot_dimension_numbers<[1], [0], [0], [1], [0, 0, 1, 1], [], []>} : vector<8x256xbf16>, vector<256x256xbf16>, vector<8x256xf32> -> vector<8x256xf32>
    %c0_9 = arith.constant 0 : index
    %c0_10 = arith.constant 0 : index
    %12 = vector.load %arg5[%c0_9, %c0_10] : memref<1x256xf32, #tpu.memory_space<vmem>>, vector<1x256xf32>
    %13 = vector.broadcast %12 : vector<1x256xf32> to vector<8x256xf32>
    %14 = arith.addf %11, %13 : vector<8x256xf32>
    %cst_11 = arith.constant 0.000000e+00 : f32
    %15 = vector.broadcast %cst_11 : f32 to vector<8x256xf32>
    %16 = arith.maximumf %14, %15 : vector<8x256xf32>
    %17 = arith.truncf %16 : vector<8x256xf32> to vector<8x256xbf16>
    %c0_12 = arith.constant 0 : index
    %c0_13 = arith.constant 0 : index
    %18 = vector.load %arg6[%c0_12, %c0_13] : memref<256x128xbf16, #tpu.memory_space<vmem>>, vector<256x128xbf16>
    %cst_14 = arith.constant dense<0.000000e+00> : vector<8x128xf32>
    %19 = tpu.matmul %17, %18, %cst_14 {dimension_numbers = #tpu.dot_dimension_numbers<[1], [0], [0], [1], [0, 0, 1, 1], [], []>} : vector<8x256xbf16>, vector<256x128xbf16>, vector<8x128xf32> -> vector<8x128xf32>
    %c0_15 = arith.constant 0 : index
    %c0_16 = arith.constant 0 : index
    %20 = vector.load %arg7[%c0_15, %c0_16] : memref<1x128xf32, #tpu.memory_space<vmem>>, vector<1x128xf32>
    %21 = vector.broadcast %20 : vector<1x128xf32> to vector<8x128xf32>
    %22 = arith.addf %19, %21 : vector<8x128xf32>
    %c0_17 = arith.constant 0 : index
    %c0_18 = arith.constant 0 : index
    %23 = vector.load %arg8[%c0_17, %c0_18] : memref<8x128xf32, #tpu.memory_space<vmem>>, vector<8x128xf32>
    tpu.vector_store %arg8[%c0_17, %c0_18], %22 {strides = array<i32>} : memref<8x128xf32, #tpu.memory_space<vmem>>, vector<8x128xf32>,
    return
  }
  func.func @transform_0(%arg0: i32) -> (i32, i32) {
    %c0_i32 = arith.constant 0 : i32
    %c0_i32_0 = arith.constant 0 : i32
    return %arg0, %c0_i32 : i32, i32
  }
  func.func @transform_1(%arg0: i32) -> (i32, i32) {
    %c0_i32 = arith.constant 0 : i32
    %c0_i32_0 = arith.constant 0 : i32
    %c0_i32_1 = arith.constant 0 : i32
    return %c0_i32, %c0_i32_0 : i32, i32
  }
  func.func @transform_2(%arg0: i32) -> (i32, i32) {
    %c0_i32 = arith.constant 0 : i32
    %c0_i32_0 = arith.constant 0 : i32
    %c0_i32_1 = arith.constant 0 : i32
    return %c0_i32, %c0_i32_0 : i32, i32
  }
  func.func @transform_3(%arg0: i32) -> (i32, i32) {
    %c0_i32 = arith.constant 0 : i32
    %c0_i32_0 = arith.constant 0 : i32
    %c0_i32_1 = arith.constant 0 : i32
    return %c0_i32, %c0_i32_0 : i32, i32
  }
  func.func @transform_4(%arg0: i32) -> (i32, i32) {
    %c0_i32 = arith.constant 0 : i32
    %c0_i32_0 = arith.constant 0 : i32
    %c0_i32_1 = arith.constant 0 : i32
    return %c0_i32, %c0_i32_0 : i32, i32
  }
  func.func @transform_5(%arg0: i32) -> (i32, i32) {
    %c0_i32 = arith.constant 0 : i32
    %c0_i32_0 = arith.constant 0 : i32
    %c0_i32_1 = arith.constant 0 : i32
    return %c0_i32, %c0_i32_0 : i32, i32
  }
  func.func @transform_6(%arg0: i32) -> (i32, i32) {
    %c0_i32 = arith.constant 0 : i32
    %c0_i32_0 = arith.constant 0 : i32
    %c0_i32_1 = arith.constant 0 : i32
    return %c0_i32, %c0_i32_0 : i32, i32
  }
  func.func @transform_7(%arg0: i32) -> (i32, i32) {
    %c0_i32 = arith.constant 0 : i32
    %c0_i32_0 = arith.constant 0 : i32
    return %arg0, %c0_i32 : i32, i32
  }
}

</mosaic_0001>

<llo_original>
// kernel: classifier_d_forward.1
$region0: #{classifier_d_forward.1}
  #allocation0 [shape = 'u32[]', space=smem, size = 0x4, offset = 0x4, fixed_abs, tag = 'smem constant byte address 0x4 - core index']
  #allocation1 [shape = 'u32[144,128]{1,0:T(1,128)}', space=vmem, size = 0x12000, scoped, tag = 'internal scratch']
  %s0 = inlined_call_operand.vmem [shape: f32[2,784], index: 0, kind: input, shape index: {}]
  %s1 = inlined_call_operand.hbm [shape: bf16[784,256], index: 1, kind: input, shape index: {}]
  %s2 = inlined_call_operand.vmem [shape: f32[1,256], index: 2, kind: input, shape index: {}]
  %s3 = inlined_call_operand.hbm [shape: bf16[256,256], index: 3, kind: input, shape index: {}]
  %s4 = inlined_call_operand.vmem [shape: f32[1,256], index: 4, kind: input, shape index: {}]
  %s5 = inlined_call_operand.vmem [shape: bf16[256,128], index: 5, kind: input, shape index: {}]
  %s6 = inlined_call_operand.vmem [shape: f32[1,128], index: 6, kind: input, shape index: {}]
  %s7 = inlined_call_operand.hbm [shape: f32[2,128], index: 7, kind: output, shape index: {}]
  %s8 = sld [smem:[#allocation0]]
  $region46: #{classifier_d_forward.1} parent=0
    _
  %s10 = ssub.s32 1, %s8
  %s11 = scalar_select 0, %s10, %s8
  $region1: #{classifier_d_forward.1} parent=0
    #allocation2 [shape = 'u8[401408]{0}', space=vmem, size = 0x62000, scoped, tag = 'input window, operand 1, single buffered']
    #allocation3 [shape = 's32[1]{0}', space=sflag, size = 0x4, scoped, tag = 'scoped memory for classifier_d_forward.1']
    #allocation4 [shape = 's32[1]{0}', space=sflag, size = 0x4, scoped, tag = 'scoped memory for classifier_d_forward.1']
    #allocation5 [shape = 'u8[131072]{0}', space=vmem, size = 0x20000, scoped, tag = 'input window, operand 3, single buffered']
    #allocation6 [shape = 's32[1]{0}', space=sflag, size = 0x4, scoped, tag = 'scoped memory for classifier_d_forward.1']
    #allocation7 [shape = 'u8[4096]{0}', space=vmem, size = 0x1000, scoped, tag = 'output window, operand 0, single buffered']
    %12 = vsyncpa [#allocation3], 0
    %13 = vsyncpa [#allocation6], 0
    %14 = vsyncpa [#allocation4], 0
    // Predicated region
    $region2: #{classifier_d_forward.1} parent=1 // pred_check
      _
    $region3: #{classifier_d_forward.1} parent=1 // pred_check_branch
      %16 = sbr.rel (0) target = $region5
    $region4: #{classifier_d_forward.1} parent=1 // pred_region
      _
    $region5: #{classifier_d_forward.1} parent=1 // pred_fallthru
      _
    // Predicated region
    $region6: #{classifier_d_forward.1} parent=1 // pred_check
      _
    $region7: #{classifier_d_forward.1} parent=1 // pred_check_branch
      %18 = sbr.rel (0) target = $region9
    $region8: #{classifier_d_forward.1} parent=1 // pred_region
      %s20 = ssub.s32 12544, 12544
      %21 = vsyncadd [#allocation3], %s20
      %s22 = sshll.u32 [#allocation2], 4
      %s23 = int_to_ptr.vmem [resolvable:$true] %s22
      %28 = dma.hbm_to_vmem [thread:$0]  %s1, 12544, %s23, [#allocation3], 128, 128, 8
    $region9: #{classifier_d_forward.1} parent=1 // pred_fallthru
      _
    // Predicated region
    $region10: #{classifier_d_forward.1} parent=1 // pred_check
      _
    $region11: #{classifier_d_forward.1} parent=1 // pred_check_branch
      %30 = sbr.rel (0) target = $region13
    $region12: #{classifier_d_forward.1} parent=1 // pred_region
      _
    $region13: #{classifier_d_forward.1} parent=1 // pred_fallthru
      _
    // Predicated region
    $region14: #{classifier_d_forward.1} parent=1 // pred_check
      _
    $region15: #{classifier_d_forward.1} parent=1 // pred_check_branch
      %32 = sbr.rel (0) target = $region17
    $region16: #{classifier_d_forward.1} parent=1 // pred_region
      %s34 = ssub.s32 4096, 4096
      %35 = vsyncadd [#allocation6], %s34
      %s36 = sshll.u32 [#allocation5], 4
      %s37 = int_to_ptr.vmem [resolvable:$true] %s36
      %42 = dma.hbm_to_vmem [thread:$0]  %s3, 4096, %s37, [#allocation6], 128, 128, 8
    $region17: #{classifier_d_forward.1} parent=1 // pred_fallthru
      _
    // Predicated region
    $region18: #{classifier_d_forward.1} parent=1 // pred_check
      _
    $region19: #{classifier_d_forward.1} parent=1 // pred_check_branch
      %44 = sbr.rel (0) target = $region21
    $region20: #{classifier_d_forward.1} parent=1 // pred_region
      _
    $region21: #{classifier_d_forward.1} parent=1 // pred_fallthru
      _
    // Predicated region
    $region22: #{classifier_d_forward.1} parent=1 // pred_check
      _
    $region23: #{classifier_d_forward.1} parent=1 // pred_check_branch
      %46 = sbr.rel (0) target = $region25
    $region24: #{classifier_d_forward.1} parent=1 // pred_region
      _
    $region25: #{classifier_d_forward.1} parent=1 // pred_fallthru
      _
    // Predicated region
    $region26: #{classifier_d_forward.1} parent=1 // pred_check
      _
    $region27: #{classifier_d_forward.1} parent=1 // pred_check_branch
      %48 = sbr.rel (0) target = $region29
    $region28: #{classifier_d_forward.1} parent=1 // pred_region
      _
    $region29: #{classifier_d_forward.1} parent=1 // pred_fallthru
      _
    // Predicated region
    $region30: #{classifier_d_forward.1} parent=1 // pred_check
      _
    $region31: #{classifier_d_forward.1} parent=1 // pred_check_branch
      %50 = sbr.rel (0) target = $region33
    $region32: #{classifier_d_forward.1} parent=1 // pred_region
      %51 = dma.done [#allocation3], 12544
    $region33: #{classifier_d_forward.1} parent=1 // pred_fallthru
      _
    // Predicated region
    $region34: #{classifier_d_forward.1} parent=1 // pred_check
      _
    $region35: #{classifier_d_forward.1} parent=1 // pred_check_branch
      %53 = sbr.rel (0) target = $region37
    $region36: #{classifier_d_forward.1} parent=1 // pred_region
      %54 = dma.done [#allocation6], 4096
    $region37: #{classifier_d_forward.1} parent=1 // pred_fallthru
      _
    %v56 = vld [vmem:[%s0] sm:$0xff]
    %v57 = vld [vmem:[%s0 + $0x8] sm:$0x3f]
    %v58 = vld [vmem:[%s0 + $0xe] sm:$0xff]
    %v59 = vld [vmem:[%s0 + $0x16] sm:$0x3f]
    %v60 = vld [vmem:[%s0 + $0x1c] sm:$0xff]
    %v61 = vld [vmem:[%s0 + $0x24] sm:$0x3f]
    %v62 = vld [vmem:[%s0 + $0x2a] sm:$0xff]
    %v63 = vld [vmem:[%s0 + $0x32] sm:$0x3f]
    %v72 = vcombine.low %v56, %v58
    %v73 = vcombine.high %v56, %v58
    %v74 = vcombine.low %v60, %v62
    %v75 = vcombine.high %v60, %v62
    %v77 = vunpack.c.l.s4 1983009808
    %v78 = vunpack.c.0.s8 %v77
    %v79 = vlaneseq
    %v80 = vshrl.u32 %v79, 7
    %v81 = vsub.s32 %v78, %v80
    %v82 = vrot.slane %v72, %v81
    %v84 = vunpack.c.l.s4 1983009808
    %v85 = vunpack.c.0.s8 %v84
    %v86 = vlaneseq
    %v87 = vshrl.u32 %v86, 7
    %v88 = vsub.s32 %v85, %v87
    %v89 = vrot.slane %v73, %v88
    %v91 = vunpack.c.l.s4 1983009808
    %v92 = vunpack.c.0.s8 %v91
    %v93 = vlaneseq
    %v94 = vshrl.u32 %v93, 7
    %v95 = vsub.s32 %v92, %v94
    %v96 = vrot.slane %v74, %v95
    %v98 = vunpack.c.l.s4 1983009808
    %v99 = vunpack.c.0.s8 %v98
    %v100 = vlaneseq
    %v101 = vshrl.u32 %v100, 7
    %v102 = vsub.s32 %v99, %v101
    %v103 = vrot.slane %v75, %v102
    %v104 = vcombine.low %v82, %v96
    %v105 = vcombine.high %v82, %v96
    %v106 = vcombine.low %v89, %v103
    %v107 = vcombine.high %v89, %v103
    %v108 = vcombine.low %v57, %v59
    %v109 = vcombine.high %v57, %v59
    %v110 = vcombine.low %v61, %v63
    %v111 = vcombine.high %v61, %v63
    %v113 = vunpack.c.l.s4 1983009808
    %v114 = vunpack.c.0.s8 %v113
    %v115 = vlaneseq
    %v116 = vshrl.u32 %v115, 7
    %v117 = vsub.s32 %v114, %v116
    %v118 = vrot.slane %v108, %v117
    %v120 = vunpack.c.l.s4 1983009808
    %v121 = vunpack.c.0.s8 %v120
    %v122 = vlaneseq
    %v123 = vshrl.u32 %v122, 7
    %v124 = vsub.s32 %v121, %v123
    %v125 = vrot.slane %v109, %v124
    %v127 = vunpack.c.l.s4 1983009808
    %v128 = vunpack.c.0.s8 %v127
    %v129 = vlaneseq
    %v130 = vshrl.u32 %v129, 7
    %v131 = vsub.s32 %v128, %v130
    %v132 = vrot.slane %v110, %v131
    %v134 = vunpack.c.l.s4 1983009808
    %v135 = vunpack.c.0.s8 %v134
    %v136 = vlaneseq
    %v137 = vshrl.u32 %v136, 7
    %v138 = vsub.s32 %v135, %v137
    %v139 = vrot.slane %v111, %v138
    %v140 = vcombine.low %v118, %v132
    %v141 = vcombine.high %v118, %v132
    %v142 = vcombine.low %v125, %v139
    %v150 = vpack.c.bf16 %v104, %v104
    %v151 = vpack.c.bf16 %v105, %v105
    %v152 = vpack.c.bf16 %v106, %v106
    %v153 = vpack.c.bf16 %v107, %v107
    %v154 = vpack.c.bf16 %v140, %v140
    %v155 = vpack.c.bf16 %v141, %v141
    %v156 = vpack.c.bf16 %v142, %v142
    %v157 = vld [vmem:[#allocation2] sm:$0xff]
    %v158 = vld [vmem:[#allocation2 + $0x8] sm:$0xff]
    %v159 = vld [vmem:[#allocation2 + $0x10] sm:$0xff]
    %v160 = vld [vmem:[#allocation2 + $0x18] sm:$0xff]
    %v161 = vld [vmem:[#allocation2 + $0x20] sm:$0xff]
    %v162 = vld [vmem:[#allocation2 + $0x28] sm:$0xff]
    %v163 = vld [vmem:[#allocation2 + $0x30] sm:$0xff]
    %v164 = vld [vmem:[#allocation2 + $0x38] sm:$0xff]
    %v165 = vld [vmem:[#allocation2 + $0x40] sm:$0xff]
    %v166 = vld [vmem:[#allocation2 + $0x48] sm:$0xff]
    %v167 = vld [vmem:[#allocation2 + $0x50] sm:$0xff]
    %v168 = vld [vmem:[#allocation2 + $0x58] sm:$0xff]
    %v169 = vld [vmem:[#allocation2 + $0x60] sm:$0xff]
    %v170 = vld [vmem:[#allocation2 + $0x68] sm:$0xff]
    %v171 = vld [vmem:[#allocation2 + $0x70] sm:$0xff]
    %v172 = vld [vmem:[#allocation2 + $0x78] sm:$0xff]
    %v173 = vld [vmem:[#allocation2 + $0x80] sm:$0xff]
    %v174 = vld [vmem:[#allocation2 + $0x88] sm:$0xff]
    %v175 = vld [vmem:[#allocation2 + $0x90] sm:$0xff]
    %v176 = vld [vmem:[#allocation2 + $0x98] sm:$0xff]
    %v177 = vld [vmem:[#allocation2 + $0xa0] sm:$0xff]
    %v178 = vld [vmem:[#allocation2 + $0xa8] sm:$0xff]
    %v179 = vld [vmem:[#allocation2 + $0xb0] sm:$0xff]
    %v180 = vld [vmem:[#allocation2 + $0xb8] sm:$0xff]
    %v181 = vld [vmem:[#allocation2 + $0xc0] sm:$0xff]
    %v182 = vld [vmem:[#allocation2 + $0xc8] sm:$0xff]
    %v183 = vld [vmem:[#allocation2 + $0xd0] sm:$0xff]
    %v184 = vld [vmem:[#allocation2 + $0xd8] sm:$0xff]
    %v185 = vld [vmem:[#allocation2 + $0xe0] sm:$0xff]
    %v186 = vld [vmem:[#allocation2 + $0xe8] sm:$0xff]
    %v187 = vld [vmem:[#allocation2 + $0xf0] sm:$0xff]
    %v188 = vld [vmem:[#allocation2 + $0xf8] sm:$0xff]
    %v189 = vld [vmem:[#allocation2 + $0x100] sm:$0xff]
    %v190 = vld [vmem:[#allocation2 + $0x108] sm:$0xff]
    %v191 = vld [vmem:[#allocation2 + $0x110] sm:$0xff]
    %v192 = vld [vmem:[#allocation2 + $0x118] sm:$0xff]
    %v193 = vld [vmem:[#allocation2 + $0x120] sm:$0xff]
    %v194 = vld [vmem:[#allocation2 + $0x128] sm:$0xff]
    %v195 = vld [vmem:[#allocation2 + $0x130] sm:$0xff]
    %v196 = vld [vmem:[#allocation2 + $0x138] sm:$0xff]
    %v197 = vld [vmem:[#allocation2 + $0x140] sm:$0xff]
    %v198 = vld [vmem:[#allocation2 + $0x148] sm:$0xff]
    %v199 = vld [vmem:[#allocation2 + $0x150] sm:$0xff]
    %v200 = vld [vmem:[#allocation2 + $0x158] sm:$0xff]
    %v201 = vld [vmem:[#allocation2 + $0x160] sm:$0xff]
    %v202 = vld [vmem:[#allocation2 + $0x168] sm:$0xff]
    %v203 = vld [vmem:[#allocation2 + $0x170] sm:$0xff]
    %v204 = vld [vmem:[#allocation2 + $0x178] sm:$0xff]
    %v205 = vld [vmem:[#allocation2 + $0x180] sm:$0xff]
    %v206 = vld [vmem:[#allocation2 + $0x188] sm:$0xff]
    %v207 = vld [vmem:[#allocation2 + $0x190] sm:$0xff]
    %v208 = vld [vmem:[#allocation2 + $0x198] sm:$0xff]
    %v209 = vld [vmem:[#allocation2 + $0x1a0] sm:$0xff]
    %v210 = vld [vmem:[#allocation2 + $0x1a8] sm:$0xff]
    %v211 = vld [vmem:[#allocation2 + $0x1b0] sm:$0xff]
    %v212 = vld [vmem:[#allocation2 + $0x1b8] sm:$0xff]
    %v213 = vld [vmem:[#allocation2 + $0x1c0] sm:$0xff]
    %v214 = vld [vmem:[#allocation2 + $0x1c8] sm:$0xff]
    %v215 = vld [vmem:[#allocation2 + $0x1d0] sm:$0xff]
    %v216 = vld [vmem:[#allocation2 + $0x1d8] sm:$0xff]
    %v217 = vld [vmem:[#allocation2 + $0x1e0] sm:$0xff]
    %v218 = vld [vmem:[#allocation2 + $0x1e8] sm:$0xff]
    %v219 = vld [vmem:[#allocation2 + $0x1f0] sm:$0xff]
    %v220 = vld [vmem:[#allocation2 + $0x1f8] sm:$0xff]
    %v221 = vld [vmem:[#allocation2 + $0x200] sm:$0xff]
    %v222 = vld [vmem:[#allocation2 + $0x208] sm:$0xff]
    %v223 = vld [vmem:[#allocation2 + $0x210] sm:$0xff]
    %v224 = vld [vmem:[#allocation2 + $0x218] sm:$0xff]
    %v225 = vld [vmem:[#allocation2 + $0x220] sm:$0xff]
    %v226 = vld [vmem:[#allocation2 + $0x228] sm:$0xff]
    %v227 = vld [vmem:[#allocation2 + $0x230] sm:$0xff]
    %v228 = vld [vmem:[#allocation2 + $0x238] sm:$0xff]
    %v229 = vld [vmem:[#allocation2 + $0x240] sm:$0xff]
    %v230 = vld [vmem:[#allocation2 + $0x248] sm:$0xff]
    %v231 = vld [vmem:[#allocation2 + $0x250] sm:$0xff]
    %v232 = vld [vmem:[#allocation2 + $0x258] sm:$0xff]
    %v233 = vld [vmem:[#allocation2 + $0x260] sm:$0xff]
    %v234 = vld [vmem:[#allocation2 + $0x268] sm:$0xff]
    %v235 = vld [vmem:[#allocation2 + $0x270] sm:$0xff]
    %v236 = vld [vmem:[#allocation2 + $0x278] sm:$0xff]
    %v237 = vld [vmem:[#allocation2 + $0x280] sm:$0xff]
    %v238 = vld [vmem:[#allocation2 + $0x288] sm:$0xff]
    %v239 = vld [vmem:[#allocation2 + $0x290] sm:$0xff]
    %v240 = vld [vmem:[#allocation2 + $0x298] sm:$0xff]
    %v241 = vld [vmem:[#allocation2 + $0x2a0] sm:$0xff]
    %v242 = vld [vmem:[#allocation2 + $0x2a8] sm:$0xff]
    %v243 = vld [vmem:[#allocation2 + $0x2b0] sm:$0xff]
    %v244 = vld [vmem:[#allocation2 + $0x2b8] sm:$0xff]
    %v245 = vld [vmem:[#allocation2 + $0x2c0] sm:$0xff]
    %v246 = vld [vmem:[#allocation2 + $0x2c8] sm:$0xff]
    %v247 = vld [vmem:[#allocation2 + $0x2d0] sm:$0xff]
    %v248 = vld [vmem:[#allocation2 + $0x2d8] sm:$0xff]
    %v249 = vld [vmem:[#allocation2 + $0x2e0] sm:$0xff]
    %v250 = vld [vmem:[#allocation2 + $0x2e8] sm:$0xff]
    %v251 = vld [vmem:[#allocation2 + $0x2f0] sm:$0xff]
    %v252 = vld [vmem:[#allocation2 + $0x2f8] sm:$0xff]
    %v253 = vld [vmem:[#allocation2 + $0x300] sm:$0xff]
    %v254 = vld [vmem:[#allocation2 + $0x308] sm:$0xff]
    %v255 = vld [vmem:[%s2] sm:$0x3]
    %v257 = vlaneseq
    %v258 = vshrl.u32 %v257, 7
    %v259 = vsub.s32 0, %v258
    %v260 = vrot.slane %v255, %v259
    %v261 = vlaneseq
    %v262 = vshrl.u32 %v261, 7
    %v263 = vsub.s32 1, %v262
    %v264 = vrot.slane %v255, %v263
    %v365 = vunpack.c.l.b16 %v157
    %v366 = vunpack.c.h.b16 %v157
    %v367 = vunpack.c.l.b16 %v158
    %v368 = vunpack.c.h.b16 %v158
    %v369 = vunpack.c.l.b16 %v159
    %v370 = vunpack.c.h.b16 %v159
    %v371 = vunpack.c.l.b16 %v160
    %v372 = vunpack.c.h.b16 %v160
    %v373 = vunpack.c.l.b16 %v161
    %v374 = vunpack.c.h.b16 %v161
    %v375 = vunpack.c.l.b16 %v162
    %v376 = vunpack.c.h.b16 %v162
    %v377 = vunpack.c.l.b16 %v163
    %v378 = vunpack.c.h.b16 %v163
    %v379 = vunpack.c.l.b16 %v164
    %v380 = vunpack.c.h.b16 %v164
    %v381 = vunpack.c.l.b16 %v165
    %v382 = vunpack.c.h.b16 %v165
    %v383 = vunpack.c.l.b16 %v166
    %v384 = vunpack.c.h.b16 %v166
    %v385 = vunpack.c.l.b16 %v167
    %v386 = vunpack.c.h.b16 %v167
    %v387 = vunpack.c.l.b16 %v168
    %v388 = vunpack.c.h.b16 %v168
    %v389 = vunpack.c.l.b16 %v169
    %v390 = vunpack.c.h.b16 %v169
    %v391 = vunpack.c.l.b16 %v170
    %v392 = vunpack.c.h.b16 %v170
    %v393 = vunpack.c.l.b16 %v171
    %v394 = vunpack.c.h.b16 %v171
    %v395 = vunpack.c.l.b16 %v172
    %v396 = vunpack.c.h.b16 %v172
    %v397 = vunpack.c.l.b16 %v173
    %v398 = vunpack.c.h.b16 %v173
    %v399 = vunpack.c.l.b16 %v174
    %v400 = vunpack.c.h.b16 %v174
    %v401 = vunpack.c.l.b16 %v175
    %v402 = vunpack.c.h.b16 %v175
    %v403 = vunpack.c.l.b16 %v176
    %v404 = vunpack.c.h.b16 %v176
    %v405 = vunpack.c.l.b16 %v177
    %v406 = vunpack.c.h.b16 %v177
    %v407 = vunpack.c.l.b16 %v178
    %v408 = vunpack.c.h.b16 %v178
    %v409 = vunpack.c.l.b16 %v179
    %v410 = vunpack.c.h.b16 %v179
    %v411 = vunpack.c.l.b16 %v180
    %v412 = vunpack.c.h.b16 %v180
    %v413 = vunpack.c.l.b16 %v181
    %v414 = vunpack.c.h.b16 %v181
    %v415 = vunpack.c.l.b16 %v182
    %v416 = vunpack.c.h.b16 %v182
    %v417 = vunpack.c.l.b16 %v183
    %v418 = vunpack.c.h.b16 %v183
    %v419 = vunpack.c.l.b16 %v184
    %v420 = vunpack.c.h.b16 %v184
    %v421 = vunpack.c.l.b16 %v185
    %v422 = vunpack.c.h.b16 %v185
    %v423 = vunpack.c.l.b16 %v186
    %v424 = vunpack.c.h.b16 %v186
    %v425 = vunpack.c.l.b16 %v187
    %v426 = vunpack.c.h.b16 %v187
    %v427 = vunpack.c.l.b16 %v188
    %v428 = vunpack.c.h.b16 %v188
    %v429 = vunpack.c.l.b16 %v189
    %v430 = vunpack.c.h.b16 %v189
    %v431 = vunpack.c.l.b16 %v190
    %v432 = vunpack.c.h.b16 %v190
    %v433 = vunpack.c.l.b16 %v191
    %v434 = vunpack.c.h.b16 %v191
    %v435 = vunpack.c.l.b16 %v192
    %v436 = vunpack.c.h.b16 %v192
    %v437 = vunpack.c.l.b16 %v193
    %v438 = vunpack.c.h.b16 %v193
    %v439 = vunpack.c.l.b16 %v194
    %v440 = vunpack.c.h.b16 %v194
    %v441 = vunpack.c.l.b16 %v195
    %v442 = vunpack.c.h.b16 %v195
    %v443 = vunpack.c.l.b16 %v196
    %v444 = vunpack.c.h.b16 %v196
    %v445 = vunpack.c.l.b16 %v197
    %v446 = vunpack.c.h.b16 %v197
    %v447 = vunpack.c.l.b16 %v198
    %v448 = vunpack.c.h.b16 %v198
    %v449 = vunpack.c.l.b16 %v199
    %v450 = vunpack.c.h.b16 %v199
    %v451 = vunpack.c.l.b16 %v200
    %v452 = vunpack.c.h.b16 %v200
    %v453 = vunpack.c.l.b16 %v201
    %v454 = vunpack.c.h.b16 %v201
    %v455 = vunpack.c.l.b16 %v202
    %v456 = vunpack.c.h.b16 %v202
    %v457 = vunpack.c.l.b16 %v203
    %v458 = vunpack.c.h.b16 %v203
    %v459 = vunpack.c.l.b16 %v204
    %v460 = vunpack.c.h.b16 %v204
    %v461 = vunpack.c.l.b16 %v205
    %v462 = vunpack.c.h.b16 %v205
    %v463 = vunpack.c.l.b16 %v206
    %v464 = vunpack.c.h.b16 %v206
    %v465 = vunpack.c.l.b16 %v207
    %v466 = vunpack.c.h.b16 %v207
    %v467 = vunpack.c.l.b16 %v208
    %v468 = vunpack.c.h.b16 %v208
    %v469 = vunpack.c.l.b16 %v209
    %v470 = vunpack.c.h.b16 %v209
    %v471 = vunpack.c.l.b16 %v210
    %v472 = vunpack.c.h.b16 %v210
    %v473 = vunpack.c.l.b16 %v211
    %v474 = vunpack.c.h.b16 %v211
    %v475 = vunpack.c.l.b16 %v212
    %v476 = vunpack.c.h.b16 %v212
    %v477 = vunpack.c.l.b16 %v213
    %v478 = vunpack.c.h.b16 %v213
    %v479 = vunpack.c.l.b16 %v214
    %v480 = vunpack.c.h.b16 %v214
    %v481 = vunpack.c.l.b16 %v215
    %v482 = vunpack.c.h.b16 %v215
    %v483 = vunpack.c.l.b16 %v216
    %v484 = vunpack.c.h.b16 %v216
    %v485 = vunpack.c.l.b16 %v217
    %v486 = vunpack.c.h.b16 %v217
    %v487 = vunpack.c.l.b16 %v218
    %v488 = vunpack.c.h.b16 %v218
    %v489 = vunpack.c.l.b16 %v219
    %v490 = vunpack.c.h.b16 %v219
    %v491 = vunpack.c.l.b16 %v220
    %v492 = vunpack.c.h.b16 %v220
    %v493 = vunpack.c.l.b16 %v221
    %v494 = vunpack.c.h.b16 %v221
    %v495 = vunpack.c.l.b16 %v222
    %v496 = vunpack.c.h.b16 %v222
    %v497 = vunpack.c.l.b16 %v223
    %v498 = vunpack.c.h.b16 %v223
    %v499 = vunpack.c.l.b16 %v224
    %v500 = vunpack.c.h.b16 %v224
    %v501 = vunpack.c.l.b16 %v225
    %v502 = vunpack.c.h.b16 %v225
    %v503 = vunpack.c.l.b16 %v226
    %v504 = vunpack.c.h.b16 %v226
    %v505 = vunpack.c.l.b16 %v227
    %v506 = vunpack.c.h.b16 %v227
    %v507 = vunpack.c.l.b16 %v228
    %v508 = vunpack.c.h.b16 %v228
    %v509 = vunpack.c.l.b16 %v229
    %v510 = vunpack.c.h.b16 %v229
    %v511 = vunpack.c.l.b16 %v230
    %v512 = vunpack.c.h.b16 %v230
    %v513 = vunpack.c.l.b16 %v231
    %v514 = vunpack.c.h.b16 %v231
    %v515 = vunpack.c.l.b16 %v232
    %v516 = vunpack.c.h.b16 %v232
    %v517 = vunpack.c.l.b16 %v233
    %v518 = vunpack.c.h.b16 %v233
    %v519 = vunpack.c.l.b16 %v234
    %v520 = vunpack.c.h.b16 %v234
    %v521 = vunpack.c.l.b16 %v235
    %v522 = vunpack.c.h.b16 %v235
    %v523 = vunpack.c.l.b16 %v236
    %v524 = vunpack.c.h.b16 %v236
    %v525 = vunpack.c.l.b16 %v237
    %v526 = vunpack.c.h.b16 %v237
    %v527 = vunpack.c.l.b16 %v238
    %v528 = vunpack.c.h.b16 %v238
    %v529 = vunpack.c.l.b16 %v239
    %v530 = vunpack.c.h.b16 %v239
    %v531 = vunpack.c.l.b16 %v240
    %v532 = vunpack.c.h.b16 %v240
    %v533 = vunpack.c.l.b16 %v241
    %v534 = vunpack.c.h.b16 %v241
    %v535 = vunpack.c.l.b16 %v242
    %v536 = vunpack.c.h.b16 %v242
    %v537 = vunpack.c.l.b16 %v243
    %v538 = vunpack.c.h.b16 %v243
    %v539 = vunpack.c.l.b16 %v244
    %v540 = vunpack.c.h.b16 %v244
    %v541 = vunpack.c.l.b16 %v245
    %v542 = vunpack.c.h.b16 %v245
    %v543 = vunpack.c.l.b16 %v246
    %v544 = vunpack.c.h.b16 %v246
    %v545 = vunpack.c.l.b16 %v247
    %v546 = vunpack.c.h.b16 %v247
    %v547 = vunpack.c.l.b16 %v248
    %v548 = vunpack.c.h.b16 %v248
    %v549 = vunpack.c.l.b16 %v249
    %v550 = vunpack.c.h.b16 %v249
    %v551 = vunpack.c.l.b16 %v250
    %v552 = vunpack.c.h.b16 %v250
    %v553 = vunpack.c.l.b16 %v251
    %v554 = vunpack.c.h.b16 %v251
    %v555 = vunpack.c.l.b16 %v252
    %v556 = vunpack.c.h.b16 %v252
    %v557 = vunpack.c.l.b16 %v253
    %v558 = vunpack.c.h.b16 %v253
    %v559 = vunpack.c.l.b16 %v254
    %v560 = vunpack.c.h.b16 %v254
    %v561 = vpack.c.b16 %v367, %v365
    %v562 = vpack.c.b16 %v368, %v366
    %v563 = vpack.c.b16 %v371, %v369
    %v564 = vpack.c.b16 %v372, %v370
    %v565 = vpack.c.b16 %v375, %v373
    %v566 = vpack.c.b16 %v376, %v374
    %v567 = vpack.c.b16 %v379, %v377
    %v568 = vpack.c.b16 %v380, %v378
    %v569 = vpack.c.b16 %v383, %v381
    %v570 = vpack.c.b16 %v384, %v382
    %v571 = vpack.c.b16 %v387, %v385
    %v572 = vpack.c.b16 %v388, %v386
    %v573 = vpack.c.b16 %v391, %v389
    %v574 = vpack.c.b16 %v392, %v390
    %v575 = vpack.c.b16 %v395, %v393
    %v576 = vpack.c.b16 %v396, %v394
    %v577 = vpack.c.b16 %v399, %v397
    %v578 = vpack.c.b16 %v400, %v398
    %v579 = vpack.c.b16 %v403, %v401
    %v580 = vpack.c.b16 %v404, %v402
    %v581 = vpack.c.b16 %v407, %v405
    %v582 = vpack.c.b16 %v408, %v406
    %v583 = vpack.c.b16 %v411, %v409
    %v584 = vpack.c.b16 %v412, %v410
    %v585 = vpack.c.b16 %v415, %v413
    %v586 = vpack.c.b16 %v416, %v414
    %v587 = vpack.c.b16 %v419, %v417
    %v588 = vpack.c.b16 %v420, %v418
    %v589 = vpack.c.b16 %v423, %v421
    %v590 = vpack.c.b16 %v424, %v422
    %v591 = vpack.c.b16 %v427, %v425
    %v592 = vpack.c.b16 %v428, %v426
    %v593 = vpack.c.b16 %v431, %v429
    %v594 = vpack.c.b16 %v432, %v430
    %v595 = vpack.c.b16 %v435, %v433
    %v596 = vpack.c.b16 %v436, %v434
    %v597 = vpack.c.b16 %v439, %v437
    %v598 = vpack.c.b16 %v440, %v438
    %v599 = vpack.c.b16 %v443, %v441
    %v600 = vpack.c.b16 %v444, %v442
    %v601 = vpack.c.b16 %v447, %v445
    %v602 = vpack.c.b16 %v448, %v446
    %v603 = vpack.c.b16 %v451, %v449
    %v604 = vpack.c.b16 %v452, %v450
    %v605 = vpack.c.b16 %v455, %v453
    %v606 = vpack.c.b16 %v456, %v454
    %v607 = vpack.c.b16 %v459, %v457
    %v608 = vpack.c.b16 %v460, %v458
    %v609 = vpack.c.b16 %v463, %v461
    %v610 = vpack.c.b16 %v464, %v462
    %v611 = vpack.c.b16 %v467, %v465
    %v612 = vpack.c.b16 %v468, %v466
    %v613 = vpack.c.b16 %v471, %v469
    %v614 = vpack.c.b16 %v472, %v470
    %v615 = vpack.c.b16 %v475, %v473
    %v616 = vpack.c.b16 %v476, %v474
    %v617 = vpack.c.b16 %v479, %v477
    %v618 = vpack.c.b16 %v480, %v478
    %v619 = vpack.c.b16 %v483, %v481
    %v620 = vpack.c.b16 %v484, %v482
    %v621 = vpack.c.b16 %v487, %v485
    %v622 = vpack.c.b16 %v488, %v486
    %v623 = vpack.c.b16 %v491, %v489
    %v624 = vpack.c.b16 %v492, %v490
    %v625 = vpack.c.b16 %v495, %v493
    %v626 = vpack.c.b16 %v496, %v494
    %v627 = vpack.c.b16 %v499, %v497
    %v628 = vpack.c.b16 %v500, %v498
    %v629 = vpack.c.b16 %v503, %v501
    %v630 = vpack.c.b16 %v504, %v502
    %v631 = vpack.c.b16 %v507, %v505
    %v632 = vpack.c.b16 %v508, %v506
    %v633 = vpack.c.b16 %v511, %v509
    %v634 = vpack.c.b16 %v512, %v510
    %v635 = vpack.c.b16 %v515, %v513
    %v636 = vpack.c.b16 %v516, %v514
    %v637 = vpack.c.b16 %v519, %v517
    %v638 = vpack.c.b16 %v520, %v518
    %v639 = vpack.c.b16 %v523, %v521
    %v640 = vpack.c.b16 %v524, %v522
    %v641 = vpack.c.b16 %v527, %v525
    %v642 = vpack.c.b16 %v528, %v526
    %v643 = vpack.c.b16 %v531, %v529
    %v644 = vpack.c.b16 %v532, %v530
    %v645 = vpack.c.b16 %v535, %v533
    %v646 = vpack.c.b16 %v536, %v534
    %v647 = vpack.c.b16 %v539, %v537
    %v648 = vpack.c.b16 %v540, %v538
    %v649 = vpack.c.b16 %v543, %v541
    %v650 = vpack.c.b16 %v544, %v542
    %v651 = vpack.c.b16 %v547, %v545
    %v652 = vpack.c.b16 %v548, %v546
    %v653 = vpack.c.b16 %v551, %v549
    %v654 = vpack.c.b16 %v552, %v550
    %v655 = vpack.c.b16 %v555, %v553
    %v656 = vpack.c.b16 %v556, %v554
    %v657 = vpack.c.b16 %v559, %v557
    %v658 = vpack.c.b16 %v560, %v558
    %vm757 = vcmask 130048
    %v759 = vsel %vm757, %v156, 0
    %761 = vmatprep.subr.bf16.mxu0 %v576
    %762 = vmatpush1.bf16.msra.mxu0 %v575
    %763 = vmatprep.subr.bf16.mxu0 %v574
    %764 = vmatpush1.bf16.msra.mxu0 %v573
    %765 = vmatprep.subr.bf16.mxu0 %v572
    %766 = vmatpush1.bf16.msra.mxu0 %v571
    %767 = vmatprep.subr.bf16.mxu0 %v570
    %768 = vmatpush1.bf16.msra.mxu0 %v569
    %769 = vmatprep.subr.bf16.mxu0 %v568
    %770 = vmatpush1.bf16.msra.mxu0 %v567
    %771 = vmatprep.subr.bf16.mxu0 %v566
    %772 = vmatpush1.bf16.msra.mxu0 %v565
    %773 = vmatprep.subr.bf16.mxu0 %v564
    %774 = vmatpush1.bf16.msra.mxu0 %v563
    %775 = vmatprep.subr.bf16.mxu0 %v562
    %776 = vmatpush1.bf16.msra.mxu0 %v561
    %777 = vmatprep.subr.bf16.mxu0 %v592
    %778 = vmatpush2.bf16.msra.mxu0 %v591
    %779 = vmatprep.subr.bf16.mxu0 %v590
    %780 = vmatpush2.bf16.msra.mxu0 %v589
    %781 = vmatprep.subr.bf16.mxu0 %v588
    %782 = vmatpush2.bf16.msra.mxu0 %v587
    %783 = vmatprep.subr.bf16.mxu0 %v586
    %784 = vmatpush2.bf16.msra.mxu0 %v585
    %785 = vmatprep.subr.bf16.mxu0 %v584
    %786 = vmatpush2.bf16.msra.mxu0 %v583
    %787 = vmatprep.subr.bf16.mxu0 %v582
    %788 = vmatpush2.bf16.msra.mxu0 %v581
    %789 = vmatprep.subr.bf16.mxu0 %v580
    %790 = vmatpush2.bf16.msra.mxu0 %v579
    %791 = vmatprep.subr.bf16.mxu0 %v578
    %792 = vmatpush2.bf16.msra.mxu0 %v577
    %793 = vmatprep.mubr.bf16.mxu0 %v151
    %794 = vmatmul.mubr.bf16.gmra.mxu0 %v150
    %v795 = vpop.f32.mrf.mxu0
    %v796 = vadd.f32 %v260, %v795
    %v797 = vpop.f32.mrf.mxu0
    %v798 = vadd.f32 %v264, %v797
    %v799 = vpop.f32.mrf.mxu0
    %v800 = vpop.f32.mrf.mxu0
    %801 = vdwg.mxu0
    %802 = vmatprep.subr.bf16.mxu0 %v608
    %803 = vmatpush1.bf16.msra.mxu0 %v607
    %804 = vmatprep.subr.bf16.mxu0 %v606
    %805 = vmatpush1.bf16.msra.mxu0 %v605
    %806 = vmatprep.subr.bf16.mxu0 %v604
    %807 = vmatpush1.bf16.msra.mxu0 %v603
    %808 = vmatprep.subr.bf16.mxu0 %v602
    %809 = vmatpush1.bf16.msra.mxu0 %v601
    %810 = vmatprep.subr.bf16.mxu0 %v600
    %811 = vmatpush1.bf16.msra.mxu0 %v599
    %812 = vmatprep.subr.bf16.mxu0 %v598
    %813 = vmatpush1.bf16.msra.mxu0 %v597
    %814 = vmatprep.subr.bf16.mxu0 %v596
    %815 = vmatpush1.bf16.msra.mxu0 %v595
    %816 = vmatprep.subr.bf16.mxu0 %v594
    %817 = vmatpush1.bf16.msra.mxu0 %v593
    %818 = vmatprep.subr.bf16.mxu0 %v624
    %819 = vmatpush2.bf16.msra.mxu0 %v623
    %820 = vmatprep.subr.bf16.mxu0 %v622
    %821 = vmatpush2.bf16.msra.mxu0 %v621
    %822 = vmatprep.subr.bf16.mxu0 %v620
    %823 = vmatpush2.bf16.msra.mxu0 %v619
    %824 = vmatprep.subr.bf16.mxu0 %v618
    %825 = vmatpush2.bf16.msra.mxu0 %v617
    %826 = vmatprep.subr.bf16.mxu0 %v616
    %827 = vmatpush2.bf16.msra.mxu0 %v615
    %828 = vmatprep.subr.bf16.mxu0 %v614
    %829 = vmatpush2.bf16.msra.mxu0 %v613
    %830 = vmatprep.subr.bf16.mxu0 %v612
    %831 = vmatpush2.bf16.msra.mxu0 %v611
    %832 = vmatprep.subr.bf16.mxu0 %v610
    %833 = vmatpush2.bf16.msra.mxu0 %v609
    %834 = vmatprep.mubr.bf16.mxu0 %v153
    %835 = vmatmul.mubr.bf16.gmra.mxu0 %v152
    %v836 = vpop.f32.mrf.mxu0
    %v837 = vadd.f32 %v796, %v836
    %v838 = vpop.f32.mrf.mxu0
    %v839 = vadd.f32 %v798, %v838
    %v840 = vpop.f32.mrf.mxu0
    %v841 = vpop.f32.mrf.mxu0
    %842 = vdwg.mxu0
    %843 = vmatprep.subr.bf16.mxu0 %v640
    %844 = vmatpush1.bf16.msra.mxu0 %v639
    %845 = vmatprep.subr.bf16.mxu0 %v638
    %846 = vmatpush1.bf16.msra.mxu0 %v637
    %847 = vmatprep.subr.bf16.mxu0 %v636
    %848 = vmatpush1.bf16.msra.mxu0 %v635
    %849 = vmatprep.subr.bf16.mxu0 %v634
    %850 = vmatpush1.bf16.msra.mxu0 %v633
    %851 = vmatprep.subr.bf16.mxu0 %v632
    %852 = vmatpush1.bf16.msra.mxu0 %v631
    %853 = vmatprep.subr.bf16.mxu0 %v630
    %854 = vmatpush1.bf16.msra.mxu0 %v629
    %855 = vmatprep.subr.bf16.mxu0 %v628
    %856 = vmatpush1.bf16.msra.mxu0 %v627
    %857 = vmatprep.subr.bf16.mxu0 %v626
    %858 = vmatpush1.bf16.msra.mxu0 %v625
    %859 = vmatprep.subr.bf16.mxu0 %v656
    %860 = vmatpush2.bf16.msra.mxu0 %v655
    %861 = vmatprep.subr.bf16.mxu0 %v654
    %862 = vmatpush2.bf16.msra.mxu0 %v653
    %863 = vmatprep.subr.bf16.mxu0 %v652
    %864 = vmatpush2.bf16.msra.mxu0 %v651
    %865 = vmatprep.subr.bf16.mxu0 %v650
    %866 = vmatpush2.bf16.msra.mxu0 %v649
    %867 = vmatprep.subr.bf16.mxu0 %v648
    %868 = vmatpush2.bf16.msra.mxu0 %v647
    %869 = vmatprep.subr.bf16.mxu0 %v646
    %870 = vmatpush2.bf16.msra.mxu0 %v645
    %871 = vmatprep.subr.bf16.mxu0 %v644
    %872 = vmatpush2.bf16.msra.mxu0 %v643
    %873 = vmatprep.subr.bf16.mxu0 %v642
    %874 = vmatpush2.bf16.msra.mxu0 %v641
    %875 = vmatprep.mubr.bf16.mxu0 %v155
    %876 = vmatmul.mubr.bf16.gmra.mxu0 %v154
    %v877 = vpop.f32.mrf.mxu0
    %v878 = vadd.f32 %v837, %v877
    %v879 = vpop.f32.mrf.mxu0
    %v880 = vadd.f32 %v839, %v879
    %v881 = vpop.f32.mrf.mxu0
    %v882 = vpop.f32.mrf.mxu0
    %883 = vdwg.mxu0
    %884 = vmatprep.subr.bf16.mxu0 0
    %885 = vmatpush1.bf16.msra.mxu0 0
    %886 = vmatprep.subr.bf16.mxu0 0
    %887 = vmatpush1.bf16.msra.mxu0 0
    %888 = vmatprep.subr.bf16.mxu0 0
    %889 = vmatpush1.bf16.msra.mxu0 0
    %890 = vmatprep.subr.bf16.mxu0 0
    %891 = vmatpush1.bf16.msra.mxu0 0
    %892 = vmatprep.subr.bf16.mxu0 0
    %893 = vmatpush1.bf16.msra.mxu0 0
    %894 = vmatprep.subr.bf16.mxu0 0
    %895 = vmatpush1.bf16.msra.mxu0 0
    %896 = vmatprep.subr.bf16.mxu0 0
    %897 = vmatpush1.bf16.msra.mxu0 0
    %898 = vmatprep.subr.bf16.mxu0 %v658
    %899 = vmatpush1.bf16.msra.mxu0 %v657
    %900 = vmatprep.subr.bf16.mxu0 0
    %901 = vmatpush2.bf16.msra.mxu0 0
    %902 = vmatprep.subr.bf16.mxu0 0
    %903 = vmatpush2.bf16.msra.mxu0 0
    %904 = vmatprep.subr.bf16.mxu0 0
    %905 = vmatpush2.bf16.msra.mxu0 0
    %906 = vmatprep.subr.bf16.mxu0 0
    %907 = vmatpush2.bf16.msra.mxu0 0
    %908 = vmatprep.subr.bf16.mxu0 0
    %909 = vmatpush2.bf16.msra.mxu0 0
    %910 = vmatprep.subr.bf16.mxu0 0
    %911 = vmatpush2.bf16.msra.mxu0 0
    %912 = vmatprep.subr.bf16.mxu0 0
    %913 = vmatpush2.bf16.msra.mxu0 0
    %914 = vmatprep.subr.bf16.mxu0 0
    %915 = vmatpush2.bf16.msra.mxu0 0
    %916 = vmatprep.mubr.bf16.mxu0 0
    %917 = vmatmul.mubr.bf16.gmra.mxu0 %v759
    %v918 = vpop.f32.mrf.mxu0
    %v919 = vadd.f32 %v878, %v918
    %v920 = vpop.f32.mrf.mxu0
    %v921 = vadd.f32 %v880, %v920
    %v922 = vpop.f32.mrf.mxu0
    %v923 = vpop.f32.mrf.mxu0
    %924 = vdwg.mxu0
    %v925 = vmax.f32 %v919, 0.0
    %v926 = vmax.f32 %v921, 0.0
    %v927 = vpack.c.bf16 %v925, %v925
    %v928 = vpack.c.bf16 %v926, %v926
    %v929 = vld [vmem:[#allocation5] sm:$0xff]
    %v930 = vld [vmem:[#allocation5 + $0x8] sm:$0xff]
    %v931 = vld [vmem:[#allocation5 + $0x10] sm:$0xff]
    %v932 = vld [vmem:[#allocation5 + $0x18] sm:$0xff]
    %v933 = vld [vmem:[#allocation5 + $0x20] sm:$0xff]
    %v934 = vld [vmem:[#allocation5 + $0x28] sm:$0xff]
    %v935 = vld [vmem:[#allocation5 + $0x30] sm:$0xff]
    %v936 = vld [vmem:[#allocation5 + $0x38] sm:$0xff]
    %v937 = vld [vmem:[#allocation5 + $0x40] sm:$0xff]
    %v938 = vld [vmem:[#allocation5 + $0x48] sm:$0xff]
    %v939 = vld [vmem:[#allocation5 + $0x50] sm:$0xff]
    %v940 = vld [vmem:[#allocation5 + $0x58] sm:$0xff]
    %v941 = vld [vmem:[#allocation5 + $0x60] sm:$0xff]
    %v942 = vld [vmem:[#allocation5 + $0x68] sm:$0xff]
    %v943 = vld [vmem:[#allocation5 + $0x70] sm:$0xff]
    %v944 = vld [vmem:[#allocation5 + $0x78] sm:$0xff]
    %v945 = vld [vmem:[#allocation5 + $0x80] sm:$0xff]
    %v946 = vld [vmem:[#allocation5 + $0x88] sm:$0xff]
    %v947 = vld [vmem:[#allocation5 + $0x90] sm:$0xff]
    %v948 = vld [vmem:[#allocation5 + $0x98] sm:$0xff]
    %v949 = vld [vmem:[#allocation5 + $0xa0] sm:$0xff]
    %v950 = vld [vmem:[#allocation5 + $0xa8] sm:$0xff]
    %v951 = vld [vmem:[#allocation5 + $0xb0] sm:$0xff]
    %v952 = vld [vmem:[#allocation5 + $0xb8] sm:$0xff]
    %v953 = vld [vmem:[#allocation5 + $0xc0] sm:$0xff]
    %v954 = vld [vmem:[#allocation5 + $0xc8] sm:$0xff]
    %v955 = vld [vmem:[#allocation5 + $0xd0] sm:$0xff]
    %v956 = vld [vmem:[#allocation5 + $0xd8] sm:$0xff]
    %v957 = vld [vmem:[#allocation5 + $0xe0] sm:$0xff]
    %v958 = vld [vmem:[#allocation5 + $0xe8] sm:$0xff]
    %v959 = vld [vmem:[#allocation5 + $0xf0] sm:$0xff]
    %v960 = vld [vmem:[#allocation5 + $0xf8] sm:$0xff]
    %v961 = vld [vmem:[%s4] sm:$0x3]
    %v963 = vlaneseq
    %v964 = vshrl.u32 %v963, 7
    %v965 = vsub.s32 0, %v964
    %v966 = vrot.slane %v961, %v965
    %v967 = vlaneseq
    %v968 = vshrl.u32 %v967, 7
    %v969 = vsub.s32 1, %v968
    %v970 = vrot.slane %v961, %v969
    %v1005 = vunpack.c.l.b16 %v929
    %v1006 = vunpack.c.h.b16 %v929
    %v1007 = vunpack.c.l.b16 %v930
    %v1008 = vunpack.c.h.b16 %v930
    %v1009 = vunpack.c.l.b16 %v931
    %v1010 = vunpack.c.h.b16 %v931
    %v1011 = vunpack.c.l.b16 %v932
    %v1012 = vunpack.c.h.b16 %v932
    %v1013 = vunpack.c.l.b16 %v933
    %v1014 = vunpack.c.h.b16 %v933
    %v1015 = vunpack.c.l.b16 %v934
    %v1016 = vunpack.c.h.b16 %v934
    %v1017 = vunpack.c.l.b16 %v935
    %v1018 = vunpack.c.h.b16 %v935
    %v1019 = vunpack.c.l.b16 %v936
    %v1020 = vunpack.c.h.b16 %v936
    %v1021 = vunpack.c.l.b16 %v937
    %v1022 = vunpack.c.h.b16 %v937
    %v1023 = vunpack.c.l.b16 %v938
    %v1024 = vunpack.c.h.b16 %v938
    %v1025 = vunpack.c.l.b16 %v939
    %v1026 = vunpack.c.h.b16 %v939
    %v1027 = vunpack.c.l.b16 %v940
    %v1028 = vunpack.c.h.b16 %v940
    %v1029 = vunpack.c.l.b16 %v941
    %v1030 = vunpack.c.h.b16 %v941
    %v1031 = vunpack.c.l.b16 %v942
    %v1032 = vunpack.c.h.b16 %v942
    %v1033 = vunpack.c.l.b16 %v943
    %v1034 = vunpack.c.h.b16 %v943
    %v1035 = vunpack.c.l.b16 %v944
    %v1036 = vunpack.c.h.b16 %v944
    %v1037 = vunpack.c.l.b16 %v945
    %v1038 = vunpack.c.h.b16 %v945
    %v1039 = vunpack.c.l.b16 %v946
    %v1040 = vunpack.c.h.b16 %v946
    %v1041 = vunpack.c.l.b16 %v947
    %v1042 = vunpack.c.h.b16 %v947
    %v1043 = vunpack.c.l.b16 %v948
    %v1044 = vunpack.c.h.b16 %v948
    %v1045 = vunpack.c.l.b16 %v949
    %v1046 = vunpack.c.h.b16 %v949
    %v1047 = vunpack.c.l.b16 %v950
    %v1048 = vunpack.c.h.b16 %v950
    %v1049 = vunpack.c.l.b16 %v951
    %v1050 = vunpack.c.h.b16 %v951
    %v1051 = vunpack.c.l.b16 %v952
    %v1052 = vunpack.c.h.b16 %v952
    %v1053 = vunpack.c.l.b16 %v953
    %v1054 = vunpack.c.h.b16 %v953
    %v1055 = vunpack.c.l.b16 %v954
    %v1056 = vunpack.c.h.b16 %v954
    %v1057 = vunpack.c.l.b16 %v955
    %v1058 = vunpack.c.h.b16 %v955
    %v1059 = vunpack.c.l.b16 %v956
    %v1060 = vunpack.c.h.b16 %v956
    %v1061 = vunpack.c.l.b16 %v957
    %v1062 = vunpack.c.h.b16 %v957
    %v1063 = vunpack.c.l.b16 %v958
    %v1064 = vunpack.c.h.b16 %v958
    %v1065 = vunpack.c.l.b16 %v959
    %v1066 = vunpack.c.h.b16 %v959
    %v1067 = vunpack.c.l.b16 %v960
    %v1068 = vunpack.c.h.b16 %v960
    %v1069 = vpack.c.b16 %v1007, %v1005
    %v1070 = vpack.c.b16 %v1008, %v1006
    %v1071 = vpack.c.b16 %v1011, %v1009
    %v1072 = vpack.c.b16 %v1012, %v1010
    %v1073 = vpack.c.b16 %v1015, %v1013
    %v1074 = vpack.c.b16 %v1016, %v1014
    %v1075 = vpack.c.b16 %v1019, %v1017
    %v1076 = vpack.c.b16 %v1020, %v1018
    %v1077 = vpack.c.b16 %v1023, %v1021
    %v1078 = vpack.c.b16 %v1024, %v1022
    %v1079 = vpack.c.b16 %v1027, %v1025
    %v1080 = vpack.c.b16 %v1028, %v1026
    %v1081 = vpack.c.b16 %v1031, %v1029
    %v1082 = vpack.c.b16 %v1032, %v1030
    %v1083 = vpack.c.b16 %v1035, %v1033
    %v1084 = vpack.c.b16 %v1036, %v1034
    %v1085 = vpack.c.b16 %v1039, %v1037
    %v1086 = vpack.c.b16 %v1040, %v1038
    %v1087 = vpack.c.b16 %v1043, %v1041
    %v1088 = vpack.c.b16 %v1044, %v1042
    %v1089 = vpack.c.b16 %v1047, %v1045
    %v1090 = vpack.c.b16 %v1048, %v1046
    %v1091 = vpack.c.b16 %v1051, %v1049
    %v1092 = vpack.c.b16 %v1052, %v1050
    %v1093 = vpack.c.b16 %v1055, %v1053
    %v1094 = vpack.c.b16 %v1056, %v1054
    %v1095 = vpack.c.b16 %v1059, %v1057
    %v1096 = vpack.c.b16 %v1060, %v1058
    %v1097 = vpack.c.b16 %v1063, %v1061
    %v1098 = vpack.c.b16 %v1064, %v1062
    %v1099 = vpack.c.b16 %v1067, %v1065
    %v1100 = vpack.c.b16 %v1068, %v1066
    %1133 = vmatprep.subr.bf16.mxu0 %v1084
    %1134 = vmatpush1.bf16.msra.mxu0 %v1083
    %1135 = vmatprep.subr.bf16.mxu0 %v1082
    %1136 = vmatpush1.bf16.msra.mxu0 %v1081
    %1137 = vmatprep.subr.bf16.mxu0 %v1080
    %1138 = vmatpush1.bf16.msra.mxu0 %v1079
    %1139 = vmatprep.subr.bf16.mxu0 %v1078
    %1140 = vmatpush1.bf16.msra.mxu0 %v1077
    %1141 = vmatprep.subr.bf16.mxu0 %v1076
    %1142 = vmatpush1.bf16.msra.mxu0 %v1075
    %1143 = vmatprep.subr.bf16.mxu0 %v1074
    %1144 = vmatpush1.bf16.msra.mxu0 %v1073
    %1145 = vmatprep.subr.bf16.mxu0 %v1072
    %1146 = vmatpush1.bf16.msra.mxu0 %v1071
    %1147 = vmatprep.subr.bf16.mxu0 %v1070
    %1148 = vmatpush1.bf16.msra.mxu0 %v1069
    %1149 = vmatprep.subr.bf16.mxu0 %v1100
    %1150 = vmatpush2.bf16.msra.mxu0 %v1099
    %1151 = vmatprep.subr.bf16.mxu0 %v1098
    %1152 = vmatpush2.bf16.msra.mxu0 %v1097
    %1153 = vmatprep.subr.bf16.mxu0 %v1096
    %1154 = vmatpush2.bf16.msra.mxu0 %v1095
    %1155 = vmatprep.subr.bf16.mxu0 %v1094
    %1156 = vmatpush2.bf16.msra.mxu0 %v1093
    %1157 = vmatprep.subr.bf16.mxu0 %v1092
    %1158 = vmatpush2.bf16.msra.mxu0 %v1091
    %1159 = vmatprep.subr.bf16.mxu0 %v1090
    %1160 = vmatpush2.bf16.msra.mxu0 %v1089
    %1161 = vmatprep.subr.bf16.mxu0 %v1088
    %1162 = vmatpush2.bf16.msra.mxu0 %v1087
    %1163 = vmatprep.subr.bf16.mxu0 %v1086
    %1164 = vmatpush2.bf16.msra.mxu0 %v1085
    %1165 = vmatprep.mubr.bf16.mxu0 %v928
    %1166 = vmatmul.mubr.bf16.gmra.mxu0 %v927
    %v1167 = vpop.f32.mrf.mxu0
    %v1168 = vadd.f32 %v966, %v1167
    %v1169 = vpop.f32.mrf.mxu0
    %v1170 = vadd.f32 %v970, %v1169
    %v1171 = vpop.f32.mrf.mxu0
    %v1172 = vpop.f32.mrf.mxu0
    %1173 = vdwg.mxu0
    %v1174 = vmax.f32 %v1168, 0.0
    %v1175 = vmax.f32 %v1170, 0.0
    %v1176 = vpack.c.bf16 %v1174, %v1174
    %v1177 = vpack.c.bf16 %v1175, %v1175
    %v1178 = vld [vmem:[%s5] sm:$0xf]
    %v1179 = vld [vmem:[%s5 + $0x4] sm:$0xf]
    %v1180 = vld [vmem:[%s5 + $0x8] sm:$0xf]
    %v1181 = vld [vmem:[%s5 + $0xc] sm:$0xf]
    %v1182 = vld [vmem:[%s5 + $0x10] sm:$0xf]
    %v1183 = vld [vmem:[%s5 + $0x14] sm:$0xf]
    %v1184 = vld [vmem:[%s5 + $0x18] sm:$0xf]
    %v1185 = vld [vmem:[%s5 + $0x1c] sm:$0xf]
    %v1186 = vld [vmem:[%s5 + $0x20] sm:$0xf]
    %v1187 = vld [vmem:[%s5 + $0x24] sm:$0xf]
    %v1188 = vld [vmem:[%s5 + $0x28] sm:$0xf]
    %v1189 = vld [vmem:[%s5 + $0x2c] sm:$0xf]
    %v1190 = vld [vmem:[%s5 + $0x30] sm:$0xf]
    %v1191 = vld [vmem:[%s5 + $0x34] sm:$0xf]
    %v1192 = vld [vmem:[%s5 + $0x38] sm:$0xf]
    %v1193 = vld [vmem:[%s5 + $0x3c] sm:$0xf]
    %v1194 = vld [vmem:[%s5 + $0x40] sm:$0xf]
    %v1195 = vld [vmem:[%s5 + $0x44] sm:$0xf]
    %v1196 = vld [vmem:[%s5 + $0x48] sm:$0xf]
    %v1197 = vld [vmem:[%s5 + $0x4c] sm:$0xf]
    %v1198 = vld [vmem:[%s5 + $0x50] sm:$0xf]
    %v1199 = vld [vmem:[%s5 + $0x54] sm:$0xf]
    %v1200 = vld [vmem:[%s5 + $0x58] sm:$0xf]
    %v1201 = vld [vmem:[%s5 + $0x5c] sm:$0xf]
    %v1202 = vld [vmem:[%s5 + $0x60] sm:$0xf]
    %v1203 = vld [vmem:[%s5 + $0x64] sm:$0xf]
    %v1204 = vld [vmem:[%s5 + $0x68] sm:$0xf]
    %v1205 = vld [vmem:[%s5 + $0x6c] sm:$0xf]
    %v1206 = vld [vmem:[%s5 + $0x70] sm:$0xf]
    %v1207 = vld [vmem:[%s5 + $0x74] sm:$0xf]
    %v1208 = vld [vmem:[%s5 + $0x78] sm:$0xf]
    %v1209 = vld [vmem:[%s5 + $0x7c] sm:$0xf]
    %v1210 = vld [vmem:[%s6] sm:$0x1]
    %v1212 = vlaneseq
    %v1213 = vshrl.u32 %v1212, 7
    %v1214 = vsub.s32 0, %v1213
    %v1215 = vrot.slane %v1210, %v1214
    %v1249 = vunpack.c.l.b16 %v1178
    %v1250 = vunpack.c.l.b16 %v1179
    %v1251 = vunpack.c.l.b16 %v1180
    %v1252 = vunpack.c.l.b16 %v1181
    %v1253 = vunpack.c.l.b16 %v1182
    %v1254 = vunpack.c.l.b16 %v1183
    %v1255 = vunpack.c.l.b16 %v1184
    %v1256 = vunpack.c.l.b16 %v1185
    %v1257 = vunpack.c.l.b16 %v1186
    %v1258 = vunpack.c.l.b16 %v1187
    %v1259 = vunpack.c.l.b16 %v1188
    %v1260 = vunpack.c.l.b16 %v1189
    %v1261 = vunpack.c.l.b16 %v1190
    %v1262 = vunpack.c.l.b16 %v1191
    %v1263 = vunpack.c.l.b16 %v1192
    %v1264 = vunpack.c.l.b16 %v1193
    %v1265 = vunpack.c.l.b16 %v1194
    %v1266 = vunpack.c.l.b16 %v1195
    %v1267 = vunpack.c.l.b16 %v1196
    %v1268 = vunpack.c.l.b16 %v1197
    %v1269 = vunpack.c.l.b16 %v1198
    %v1270 = vunpack.c.l.b16 %v1199
    %v1271 = vunpack.c.l.b16 %v1200
    %v1272 = vunpack.c.l.b16 %v1201
    %v1273 = vunpack.c.l.b16 %v1202
    %v1274 = vunpack.c.l.b16 %v1203
    %v1275 = vunpack.c.l.b16 %v1204
    %v1276 = vunpack.c.l.b16 %v1205
    %v1277 = vunpack.c.l.b16 %v1206
    %v1278 = vunpack.c.l.b16 %v1207
    %v1279 = vunpack.c.l.b16 %v1208
    %v1280 = vunpack.c.l.b16 %v1209
    %v1281 = vpack.c.b16 %v1250, %v1249
    %v1282 = vpack.c.b16 %v1252, %v1251
    %v1283 = vpack.c.b16 %v1254, %v1253
    %v1284 = vpack.c.b16 %v1256, %v1255
    %v1285 = vpack.c.b16 %v1258, %v1257
    %v1286 = vpack.c.b16 %v1260, %v1259
    %v1287 = vpack.c.b16 %v1262, %v1261
    %v1288 = vpack.c.b16 %v1264, %v1263
    %v1289 = vpack.c.b16 %v1266, %v1265
    %v1290 = vpack.c.b16 %v1268, %v1267
    %v1291 = vpack.c.b16 %v1270, %v1269
    %v1292 = vpack.c.b16 %v1272, %v1271
    %v1293 = vpack.c.b16 %v1274, %v1273
    %v1294 = vpack.c.b16 %v1276, %v1275
    %v1295 = vpack.c.b16 %v1278, %v1277
    %v1296 = vpack.c.b16 %v1280, %v1279
    %1313 = vmatprep.subr.bf16.mxu0 0
    %1314 = vmatpush1.bf16.msra.mxu0 %v1288
    %1315 = vmatprep.subr.bf16.mxu0 0
    %1316 = vmatpush1.bf16.msra.mxu0 %v1287
    %1317 = vmatprep.subr.bf16.mxu0 0
    %1318 = vmatpush1.bf16.msra.mxu0 %v1286
    %1319 = vmatprep.subr.bf16.mxu0 0
    %1320 = vmatpush1.bf16.msra.mxu0 %v1285
    %1321 = vmatprep.subr.bf16.mxu0 0
    %1322 = vmatpush1.bf16.msra.mxu0 %v1284
    %1323 = vmatprep.subr.bf16.mxu0 0
    %1324 = vmatpush1.bf16.msra.mxu0 %v1283
    %1325 = vmatprep.subr.bf16.mxu0 0
    %1326 = vmatpush1.bf16.msra.mxu0 %v1282
    %1327 = vmatprep.subr.bf16.mxu0 0
    %1328 = vmatpush1.bf16.msra.mxu0 %v1281
    %1329 = vmatprep.subr.bf16.mxu0 0
    %1330 = vmatpush2.bf16.msra.mxu0 %v1296
    %1331 = vmatprep.subr.bf16.mxu0 0
    %1332 = vmatpush2.bf16.msra.mxu0 %v1295
    %1333 = vmatprep.subr.bf16.mxu0 0
    %1334 = vmatpush2.bf16.msra.mxu0 %v1294
    %1335 = vmatprep.subr.bf16.mxu0 0
    %1336 = vmatpush2.bf16.msra.mxu0 %v1293
    %1337 = vmatprep.subr.bf16.mxu0 0
    %1338 = vmatpush2.bf16.msra.mxu0 %v1292
    %1339 = vmatprep.subr.bf16.mxu0 0
    %1340 = vmatpush2.bf16.msra.mxu0 %v1291
    %1341 = vmatprep.subr.bf16.mxu0 0
    %1342 = vmatpush2.bf16.msra.mxu0 %v1290
    %1343 = vmatprep.subr.bf16.mxu0 0
    %1344 = vmatpush2.bf16.msra.mxu0 %v1289
    %1345 = vmatprep.mubr.bf16.mxu0 %v1177
    %1346 = vmatmul.mubr.bf16.gmra.mxu0 %v1176
    %v1347 = vpop.f32.mrf.mxu0
    %v1348 = vadd.f32 %v1215, %v1347
    %v1349 = vpop.f32.mrf.mxu0
    %v1350 = vpop.f32.mrf.mxu0
    %v1351 = vpop.f32.mrf.mxu0
    %1352 = vdwg.mxu0
    %1353 = vst [vmem:[#allocation7] sm:$0xff] %v1348
    // Predicated region
    $region38: #{classifier_d_forward.1} parent=1 // pred_check
      _
    $region39: #{classifier_d_forward.1} parent=1 // pred_check_branch
      %1355 = sbr.rel (0) target = $region41
    $region40: #{classifier_d_forward.1} parent=1 // pred_region
      %s1357 = ssub.s32 128, 32
      %1358 = vsyncadd [#allocation4], %s1357
      %s1359 = sshll.u32 [#allocation7], 4
      %s1360 = int_to_ptr.vmem [resolvable:$true] %s1359
      %1365 = dma.vmem_to_hbm [thread:$0]  %s1360, 32, %s7, [#allocation4], 32, 32, 2
    $region41: #{classifier_d_forward.1} parent=1 // pred_fallthru
      _
    // Predicated region
    $region42: #{classifier_d_forward.1} parent=1 // pred_check
      _
    $region43: #{classifier_d_forward.1} parent=1 // pred_check_branch
      %1367 = sbr.rel (0) target = $region45
    $region44: #{classifier_d_forward.1} parent=1 // pred_region
      %1368 = dma.done [#allocation4], 128
    $region45: #{classifier_d_forward.1} parent=1 // pred_fallthru
      _
    %1369 = vsyncpa [#allocation3], 1
    %1370 = vsyncpa [#allocation6], 1
    %1371 = vsyncpa [#allocation4], 1

</llo_original>
